<compile_context>
chip_gen: v5e
topology: v5e:2x2
jax: 0.10.0
libtpu: 0.0.40
codegen_flags: <defaults>
</compile_context>

<pallas_src>
import jax
import jax.numpy as jnp
from jax.experimental import pallas as pl
from jax.experimental.pallas import tpu as pltpu

HEADS = 32          # hidden size of the head (nn.Linear(heads, heads))
OUT_DIM = 3         # out_proj output features
PACK = 4            # logical rows packed per 128-lane vreg row (4*32 = 128)
TILE_M = 2048       # packed rows per grid step (= 8192 logical rows)
LN_EPS = 1e-5

_GELU_C = 0.7978845608028654            # sqrt(2/pi)
_GELU_CA = _GELU_C * 0.044715           # sqrt(2/pi) * 0.044715


def _gelu_tanh(x):
    # tanh-approximate GELU (fairseq "gelu_accurate"-style), trimmed form.
    # TODO(synk): exact erf-based GELU would need an erf lowering; tanh approx used.
    inner = x * (_GELU_C + _GELU_CA * (x * x))
    hx = 0.5 * x
    return hx + hx * jnp.tanh(inner)


def wiberg_head_kernel(x_ref, wd_ref, bd_ref, wo_ref, ssum_ref, csum_ref,
                       bo_ref, o_ref):
    # x_ref: (TILE_M, 128) = 4 logical 32-wide rows packed per row.
    # Garbage rows in a ragged last tile are harmless: packed rows are
    # independent and their OOB output writes are discarded.
    x = x_ref[...].astype(jnp.float32)

    # dense (per 32-lane segment, via block-diagonal weights): h = x @ Wd + bd
    h = jnp.dot(x, wd_ref[...], preferred_element_type=jnp.float32) + bd_ref[...]

    # activation (128-lane dense)
    g = _gelu_tanh(h)

    # out_proj (LN affine folded) + per-segment mean / E[g^2], all on the MXU.
    # ssum_ref is blockdiag(ones(32,3)/32): column 3s+j of the product is the
    # mean of segment s, i.e. mu already broadcast to the 3 output lanes.
    y0 = jnp.dot(g, wo_ref[...], preferred_element_type=jnp.float32)      # (tm,12)
    mu = jnp.dot(g, ssum_ref[...], preferred_element_type=jnp.float32)    # (tm,12)
    eg2 = jnp.dot(g * g, ssum_ref[...], preferred_element_type=jnp.float32)

    # LayerNorm applied after the 3-wide projection (cheap, 12-lane math):
    #   out = (y0 - mu*colsum(Wo)) * rsqrt(var+eps) + b
    var = jnp.maximum(eg2 - mu * mu, 0.0)        # clamp: E[g^2]-mu^2 can go < 0
    inv = jax.lax.rsqrt(var + LN_EPS)
    out = (y0 - mu * csum_ref[...]) * inv + bo_ref[...]
    o_ref[...] = out.astype(o_ref.dtype)


@jax.jit
def wiberg_head(x, wd, bd, gamma, beta, wo, bo):
    """x: (bsz, seq, seq, HEADS) -> (bsz, seq, seq, 3)."""
    bsz, s1, s2, h = x.shape
    assert h == HEADS
    n = bsz * s1 * s2
    x2 = x.reshape(n, h)                          # free reshape (contiguous)

    # Pack 4 logical rows per 128-lane row.  Pad (rarely) to a multiple of 4;
    # for the usual bsz*seq^2 shapes with even seq this is a no-op view.
    n_pad = ((n + PACK - 1) // PACK) * PACK
    if n_pad != n:
        x2 = jnp.pad(x2, ((0, n_pad - n), (0, 0)))
    m_total = n_pad // PACK
    xp = x2.reshape(m_total, PACK * h)            # (m, 128), same bytes

    # Clamp the packed tile to the (8-rounded) problem size.
    tm = min(TILE_M, max(8, ((m_total + 7) // 8) * 8))
    grid = (pl.cdiv(m_total, tm),)

    f32 = jnp.float32
    eye4 = jnp.eye(PACK, dtype=f32)
    wd_t = wd.T.astype(f32)                                    # (H, H) (in,out)
    wd_blk = jnp.kron(eye4, wd_t)                              # (128, 128)
    bd_blk = jnp.tile(bd.astype(f32), PACK)[None, :]           # (1, 128)

    # Fold LayerNorm affine into out_proj, then block-diagonalize.
    wo_eff = (gamma[:, None] * wo.T).astype(f32)               # (H, 3)
    bo_eff = (beta @ wo.T + bo).astype(f32)                    # (3,)
    wo_blk = jnp.kron(eye4, wo_eff)                            # (128, 12)
    ssum_blk = jnp.kron(eye4, jnp.full((h, OUT_DIM), 1.0 / h, f32))   # (128, 12)
    csum_blk = jnp.tile(jnp.sum(wo_eff, axis=0), PACK)[None, :]       # (1, 12)
    bo_blk = jnp.tile(bo_eff, PACK)[None, :]                          # (1, 12)

    full = lambda i: (0, 0)

    out = pl.pallas_call(
        wiberg_head_kernel,
        out_shape=jax.ShapeDtypeStruct((m_total, PACK * OUT_DIM), x.dtype),
        grid_spec=pltpu.PrefetchScalarGridSpec(
            num_scalar_prefetch=0,
            grid=grid,
            in_specs=[
                pl.BlockSpec((tm, PACK * h), lambda i: (i, 0)),   # packed x tile
                pl.BlockSpec((PACK * h, PACK * h), full),         # dense W (blkdiag)
                pl.BlockSpec((1, PACK * h), full),                # dense b (tiled)
                pl.BlockSpec((PACK * h, PACK * OUT_DIM), full),   # out_proj W (blkdiag)
                pl.BlockSpec((PACK * h, PACK * OUT_DIM), full),   # segment-mean matrix
                pl.BlockSpec((1, PACK * OUT_DIM), full),          # colsum(Wo) (tiled)
                pl.BlockSpec((1, PACK * OUT_DIM), full),          # folded bias (tiled)
            ],
            out_specs=pl.BlockSpec((tm, PACK * OUT_DIM), lambda i: (i, 0)),
        ),
        compiler_params=pltpu.CompilerParams(
            dimension_semantics=("parallel",),
            vmem_limit_bytes=48 * 1024 * 1024,   # explicit; safe on v5e/v6e/v7x
        ),
    )(xp, wd_blk, bd_blk, wo_blk, ssum_blk, csum_blk, bo_blk)

    out = out.reshape(n_pad, OUT_DIM)
    if n_pad != n:
        out = out[:n]
    return out.reshape(bsz, s1, s2, OUT_DIM)


def _reference(x, wd, bd, gamma, beta, wo, bo):
    # pure-JAX reference of the PyTorch forward (same gelu-tanh activation)
    h = jnp.einsum("...i,oi->...o", x, wd) + bd
    h = _gelu_tanh(h)
    mu = jnp.mean(h, axis=-1, keepdims=True)
    var = jnp.mean((h - mu) ** 2, axis=-1, keepdims=True)
    h = (h - mu) / jnp.sqrt(var + LN_EPS) * gamma + beta
    return jnp.einsum("...i,oi->...o", h, wo) + bo


if __name__ == "__main__":
    key = jax.random.PRNGKey(0)
    kx, k1, k2, k3, k4 = jax.random.split(key, 5)

    bsz, seq_len = 2, 8
    x = jax.random.normal(kx, (bsz, seq_len, seq_len, HEADS), jnp.float32)

    # deterministic synthetic parameters (PyTorch Linear weight layout: (out, in))
    wd = jax.random.normal(k1, (HEADS, HEADS), jnp.float32) * (1.0 / HEADS ** 0.5)
    bd = jax.random.normal(k2, (HEADS,), jnp.float32) * 0.01
    gamma = jnp.ones((HEADS,), jnp.float32)
    beta = jnp.zeros((HEADS,), jnp.float32)
    wo = jax.random.normal(k3, (OUT_DIM, HEADS), jnp.float32) * (1.0 / HEADS ** 0.5)
    bo = jax.random.normal(k4, (OUT_DIM,), jnp.float32) * 0.01

    y = wiberg_head(x, wd, bd, gamma, beta, wo, bo)
    y = jax.block_until_ready(y)

    y_ref = _reference(x, wd, bd, gamma, beta, wo, bo)
    assert y.shape == (bsz, seq_len, seq_len, OUT_DIM), y.shape
    assert jnp.allclose(y, y_ref, atol=1e-4, rtol=1e-4), float(
        jnp.max(jnp.abs(y - y_ref)))

    print("KERNEL_OK")
</pallas_src>

<mosaic_0001>
module attributes {stable_mosaic.version = 11 : i64} {
  func.func @wiberg_head_kernel(%arg0: i32, %arg1: memref<32x128xf32, #tpu.memory_space<vmem>>, %arg2: memref<128x128xf32, #tpu.memory_space<vmem>>, %arg3: memref<1x128xf32, #tpu.memory_space<vmem>>, %arg4: memref<128x12xf32, #tpu.memory_space<vmem>>, %arg5: memref<128x12xf32, #tpu.memory_space<vmem>>, %arg6: memref<1x12xf32, #tpu.memory_space<vmem>>, %arg7: memref<1x12xf32, #tpu.memory_space<vmem>>, %arg8: memref<32x12xf32, #tpu.memory_space<vmem>>) attributes {dimension_semantics = [#tpu.dimension_semantics<parallel>], iteration_bounds = array<i64: 1>, scalar_prefetch = 0 : i64, scratch_operands = 0 : i64, tpu.core_type = #tpu.core_type<tc>, window_params = [{transform_indices = @transform_0, window_bounds = array<i64: 32, 128>}, {pipeline_mode = #tpu.pipeline_mode<synchronous>, transform_indices = @transform_1, window_bounds = array<i64: 128, 128>}, {pipeline_mode = #tpu.pipeline_mode<synchronous>, transform_indices = @transform_2, window_bounds = array<i64: 1, 128>}, {pipeline_mode = #tpu.pipeline_mode<synchronous>, transform_indices = @transform_3, window_bounds = array<i64: 128, 12>}, {pipeline_mode = #tpu.pipeline_mode<synchronous>, transform_indices = @transform_4, window_bounds = array<i64: 128, 12>}, {pipeline_mode = #tpu.pipeline_mode<synchronous>, transform_indices = @transform_5, window_bounds = array<i64: 1, 12>}, {pipeline_mode = #tpu.pipeline_mode<synchronous>, transform_indices = @transform_6, window_bounds = array<i64: 1, 12>}, {transform_indices = @transform_7, window_bounds = array<i64: 32, 12>}]} {
    %c0 = arith.constant 0 : index
    %c0_0 = arith.constant 0 : index
    %0 = vector.load %arg1[%c0, %c0_0] : memref<32x128xf32, #tpu.memory_space<vmem>>, vector<32x128xf32>
    %c0_1 = arith.constant 0 : index
    %c0_2 = arith.constant 0 : index
    %1 = vector.load %arg2[%c0_1, %c0_2] : memref<128x128xf32, #tpu.memory_space<vmem>>, vector<128x128xf32>
    %cst = arith.constant dense<0.000000e+00> : vector<32x128xf32>
    %2 = tpu.matmul %0, %1, %cst {dimension_numbers = #tpu.dot_dimension_numbers<[1], [0], [0], [1], [0, 0, 1, 1], [], []>} : vector<32x128xf32>, vector<128x128xf32>, vector<32x128xf32> -> vector<32x128xf32>
    %c0_3 = arith.constant 0 : index
    %c0_4 = arith.constant 0 : index
    %3 = vector.load %arg3[%c0_3, %c0_4] : memref<1x128xf32, #tpu.memory_space<vmem>>, vector<1x128xf32>
    %4 = vector.broadcast %3 : vector<1x128xf32> to vector<32x128xf32>
    %5 = arith.addf %2, %4 : vector<32x128xf32>
    %6 = arith.mulf %5, %5 : vector<32x128xf32>
    %cst_5 = arith.constant 0.0356774069 : f32
    %7 = vector.broadcast %cst_5 : f32 to vector<32x128xf32>
    %8 = arith.mulf %7, %6 : vector<32x128xf32>
    %cst_6 = arith.constant 0.797884583 : f32
    %9 = vector.broadcast %cst_6 : f32 to vector<32x128xf32>
    %10 = arith.addf %9, %8 : vector<32x128xf32>
    %11 = arith.mulf %5, %10 : vector<32x128xf32>
    %cst_7 = arith.constant 5.000000e-01 : f32
    %12 = vector.broadcast %cst_7 : f32 to vector<32x128xf32>
    %13 = arith.mulf %12, %5 : vector<32x128xf32>
    %14 = math.tanh %11 : vector<32x128xf32>
    %15 = arith.mulf %13, %14 : vector<32x128xf32>
    %16 = arith.addf %13, %15 : vector<32x128xf32>
    %c0_8 = arith.constant 0 : index
    %c0_9 = arith.constant 0 : index
    %17 = vector.load %arg4[%c0_8, %c0_9] : memref<128x12xf32, #tpu.memory_space<vmem>>, vector<128x12xf32>
    %cst_10 = arith.constant dense<0.000000e+00> : vector<32x12xf32>
    %18 = tpu.matmul %16, %17, %cst_10 {dimension_numbers = #tpu.dot_dimension_numbers<[1], [0], [0], [1], [0, 0, 1, 1], [], []>} : vector<32x128xf32>, vector<128x12xf32>, vector<32x12xf32> -> vector<32x12xf32>
    %c0_11 = arith.constant 0 : index
    %c0_12 = arith.constant 0 : index
    %19 = vector.load %arg5[%c0_11, %c0_12] : memref<128x12xf32, #tpu.memory_space<vmem>>, vector<128x12xf32>
    %cst_13 = arith.constant dense<0.000000e+00> : vector<32x12xf32>
    %20 = tpu.matmul %16, %19, %cst_13 {dimension_numbers = #tpu.dot_dimension_numbers<[1], [0], [0], [1], [0, 0, 1, 1], [], []>} : vector<32x128xf32>, vector<128x12xf32>, vector<32x12xf32> -> vector<32x12xf32>
    %21 = arith.mulf %16, %16 : vector<32x128xf32>
    %c0_14 = arith.constant 0 : index
    %c0_15 = arith.constant 0 : index
    %22 = vector.load %arg5[%c0_14, %c0_15] : memref<128x12xf32, #tpu.memory_space<vmem>>, vector<128x12xf32>
    %cst_16 = arith.constant dense<0.000000e+00> : vector<32x12xf32>
    %23 = tpu.matmul %21, %22, %cst_16 {dimension_numbers = #tpu.dot_dimension_numbers<[1], [0], [0], [1], [0, 0, 1, 1], [], []>} : vector<32x128xf32>, vector<128x12xf32>, vector<32x12xf32> -> vector<32x12xf32>
    %24 = arith.mulf %20, %20 : vector<32x12xf32>
    %25 = arith.subf %23, %24 : vector<32x12xf32>
    %cst_17 = arith.constant 0.000000e+00 : f32
    %26 = vector.broadcast %cst_17 : f32 to vector<32x12xf32>
    %27 = arith.maximumf %25, %26 : vector<32x12xf32>
    %cst_18 = arith.constant 9.99999974E-6 : f32
    %28 = vector.broadcast %cst_18 : f32 to vector<32x12xf32>
    %29 = arith.addf %27, %28 : vector<32x12xf32>
    %30 = math.rsqrt %29 : vector<32x12xf32>
    %c0_19 = arith.constant 0 : index
    %c0_20 = arith.constant 0 : index
    %31 = vector.load %arg6[%c0_19, %c0_20] : memref<1x12xf32, #tpu.memory_space<vmem>>, vector<1x12xf32>
    %32 = vector.broadcast %31 : vector<1x12xf32> to vector<32x12xf32>
    %33 = arith.mulf %20, %32 : vector<32x12xf32>
    %34 = arith.subf %18, %33 : vector<32x12xf32>
    %35 = arith.mulf %34, %30 : vector<32x12xf32>
    %c0_21 = arith.constant 0 : index
    %c0_22 = arith.constant 0 : index
    %36 = vector.load %arg7[%c0_21, %c0_22] : memref<1x12xf32, #tpu.memory_space<vmem>>, vector<1x12xf32>
    %37 = vector.broadcast %36 : vector<1x12xf32> to vector<32x12xf32>
    %38 = arith.addf %35, %37 : vector<32x12xf32>
    %c0_23 = arith.constant 0 : index
    %c0_24 = arith.constant 0 : index
    %39 = vector.load %arg8[%c0_23, %c0_24] : memref<32x12xf32, #tpu.memory_space<vmem>>, vector<32x12xf32>
    tpu.vector_store %arg8[%c0_23, %c0_24], %38 {strides = array<i32>} : memref<32x12xf32, #tpu.memory_space<vmem>>, vector<32x12xf32>,
    return
  }
  func.func @transform_0(%arg0: i32) -> (i32, i32) {
    %c0_i32 = arith.constant 0 : i32
    %c0_i32_0 = arith.constant 0 : i32
    return %arg0, %c0_i32 : i32, i32
  }
  func.func @transform_1(%arg0: i32) -> (i32, i32) {
    %c0_i32 = arith.constant 0 : i32
    %c0_i32_0 = arith.constant 0 : i32
    %c0_i32_1 = arith.constant 0 : i32
    return %c0_i32, %c0_i32_0 : i32, i32
  }
  func.func @transform_2(%arg0: i32) -> (i32, i32) {
    %c0_i32 = arith.constant 0 : i32
    %c0_i32_0 = arith.constant 0 : i32
    %c0_i32_1 = arith.constant 0 : i32
    return %c0_i32, %c0_i32_0 : i32, i32
  }
  func.func @transform_3(%arg0: i32) -> (i32, i32) {
    %c0_i32 = arith.constant 0 : i32
    %c0_i32_0 = arith.constant 0 : i32
    %c0_i32_1 = arith.constant 0 : i32
    return %c0_i32, %c0_i32_0 : i32, i32
  }
  func.func @transform_4(%arg0: i32) -> (i32, i32) {
    %c0_i32 = arith.constant 0 : i32
    %c0_i32_0 = arith.constant 0 : i32
    %c0_i32_1 = arith.constant 0 : i32
    return %c0_i32, %c0_i32_0 : i32, i32
  }
  func.func @transform_5(%arg0: i32) -> (i32, i32) {
    %c0_i32 = arith.constant 0 : i32
    %c0_i32_0 = arith.constant 0 : i32
    %c0_i32_1 = arith.constant 0 : i32
    return %c0_i32, %c0_i32_0 : i32, i32
  }
  func.func @transform_6(%arg0: i32) -> (i32, i32) {
    %c0_i32 = arith.constant 0 : i32
    %c0_i32_0 = arith.constant 0 : i32
    %c0_i32_1 = arith.constant 0 : i32
    return %c0_i32, %c0_i32_0 : i32, i32
  }
  func.func @transform_7(%arg0: i32) -> (i32, i32) {
    %c0_i32 = arith.constant 0 : i32
    %c0_i32_0 = arith.constant 0 : i32
    return %arg0, %c0_i32 : i32, i32
  }
}

</mosaic_0001>

<llo_original>
// kernel: tile.18
$region0: #{tile.18}
  #allocation0 [shape = 's32[1]{0}', space=sflag, size = 0x4, scoped, tag = 'scoped memory for tile.18']
  %s0 = inlined_call_operand.vmem [shape: f32[32], index: 0, kind: input, shape index: {}]
  %s1 = inlined_call_operand.vmem [shape: f32[4,32], index: 1, kind: output, shape index: {}]
  // Predicated region
  $region2: #{tile.18} parent=0 // pred_check
    _
  $region3: #{tile.18} parent=0 // pred_check_branch
    %3 = sbr.rel (0) target = $region5
  $region4: #{tile.18} parent=0 // pred_region
    _
  $region5: #{tile.18} parent=0 // pred_fallthru
    _
  %v4 = vld [vmem:[%s0] ss:$0 sm:$0xff]
  %5 = vst [vmem:[%s1] sm:$0xf] %v4

// kernel: tile.19
$region0: #{tile.19}
  %s0 = inlined_call_operand.vmem [shape: f32[4,32], index: 0, kind: input, shape index: {}]
  %s1 = inlined_call_operand.vmem [shape: f32[1,128], index: 1, kind: output, shape index: {}]
  $region1: #{tile.19} parent=0
    #allocation0 [shape = 'u8[4096]{0}', space=vmem, size = 0x1000, scoped, tag = 'scoped mem for output reshape']
    #allocation1 [shape = 'u8[4096]{0}', space=vmem, size = 0x1000, scoped, tag = 'scoped mem for input reshape']
    %s3 = ssub.s32 16, 1
    %v4 = vld [vmem:[%s0] sm:%s3]
    %5 = vst [vmem:[#allocation1] sm:%s3] %v4
    %v6 = vld [vmem:[#allocation1] sm:$0x1]
    %vm7 = vcmask 261120
    %8 = vst.msk [vmem:[#allocation0] sm:$0x1] %vm7, %v6
    %s9 = scalar_lea.vmem [#allocation1], 3
    %v10 = vld [vmem:[%s9] sm:$0x1]
    %11 = vrot.lane.b32.xlu0 %v10, 96
    %v12 = vpop.permute.xlu0 %11
    %vm13 = vcmask 1048320
    %14 = vst.msk [vmem:[#allocation0] sm:$0x1] %vm13, %v12
    %s15 = scalar_lea.vmem [#allocation1], 2
    %v16 = vld [vmem:[%s15] sm:$0x1]
    %17 = vrot.lane.b32.xlu0 %v16, 64
    %v18 = vpop.permute.xlu0 %17
    %vm19 = vcmask 785920
    %20 = vst.msk [vmem:[#allocation0] sm:$0x1] %vm19, %v18
    %s21 = scalar_lea.vmem [#allocation1], 1
    %v22 = vld [vmem:[%s21] sm:$0x1]
    %23 = vrot.lane.b32.xlu0 %v22, 32
    %v24 = vpop.permute.xlu0 %23
    %vm25 = vcmask 523520
    %26 = vst.msk [vmem:[#allocation0] sm:$0x1] %vm25, %v24
    %s28 = ssub.s32 2, 1
    %v29 = vld [vmem:[#allocation0] sm:%s28]
    %s31 = ssub.s32 2, 1
    %32 = vst [vmem:[%s1] sm:%s31] %v29

// kernel: tile.23
$region0: #{tile.23}
  #allocation0 [shape = 's32[1]{0}', space=sflag, size = 0x4, scoped, tag = 'scoped memory for tile.23']
  %s0 = inlined_call_operand.vmem [shape: f32[3], index: 0, kind: input, shape index: {}]
  %s1 = inlined_call_operand.vmem [shape: f32[4,3], index: 1, kind: output, shape index: {}]
  // Predicated region
  $region2: #{tile.23} parent=0 // pred_check
    _
  $region3: #{tile.23} parent=0 // pred_check_branch
    %3 = sbr.rel (0) target = $region5
  $region4: #{tile.23} parent=0 // pred_region
    _
  $region5: #{tile.23} parent=0 // pred_fallthru
    _
  %v4 = vld [vmem:[%s0] ss:$0 sm:$0xff]
  %5 = vst [vmem:[%s1] sm:$0xf] %v4

// kernel: tile.24
$region0: #{tile.24}
  %s0 = inlined_call_operand.vmem [shape: f32[4,3], index: 0, kind: input, shape index: {}]
  %s1 = inlined_call_operand.vmem [shape: f32[1,12], index: 1, kind: output, shape index: {}]
  $region1: #{tile.24} parent=0
    #allocation0 [shape = 'u8[4096]{0}', space=vmem, size = 0x1000, scoped, tag = 'scoped mem for output reshape']
    #allocation1 [shape = 'u8[4096]{0}', space=vmem, size = 0x1000, scoped, tag = 'scoped mem for input reshape']
    %s3 = ssub.s32 16, 1
    %v4 = vld [vmem:[%s0] sm:%s3]
    %5 = vst [vmem:[#allocation1] sm:%s3] %v4
    %v6 = vld [vmem:[#allocation1] sm:$0x1]
    %vm7 = vcmask 23552
    %8 = vst.msk [vmem:[#allocation0] sm:$0x1] %vm7, %v6
    %s9 = scalar_lea.vmem [#allocation1], 3
    %v10 = vld [vmem:[%s9] sm:$0x1]
    %11 = vrot.lane.b32.xlu0 %v10, 9
    %v12 = vpop.permute.xlu0 %11
    %vm13 = vcmask 97352
    %14 = vst.msk [vmem:[#allocation0] sm:$0x1] %vm13, %v12
    %s15 = scalar_lea.vmem [#allocation1], 2
    %v16 = vld [vmem:[%s15] sm:$0x1]
    %17 = vrot.lane.b32.xlu0 %v16, 6
    %v18 = vpop.permute.xlu0 %17
    %vm19 = vcmask 72752
    %20 = vst.msk [vmem:[#allocation0] sm:$0x1] %vm19, %v18
    %s21 = scalar_lea.vmem [#allocation1], 1
    %v22 = vld [vmem:[%s21] sm:$0x1]
    %23 = vrot.lane.b32.xlu0 %v22, 3
    %v24 = vpop.permute.xlu0 %23
    %vm25 = vcmask 48152
    %26 = vst.msk [vmem:[#allocation0] sm:$0x1] %vm25, %v24
    %s28 = ssub.s32 2, 1
    %v29 = vld [vmem:[#allocation0] sm:%s28]
    %s31 = ssub.s32 2, 1
    %32 = vst [vmem:[%s1] sm:%s31] %v29

// kernel: wiberg_head.1
$region0: #{wiberg_head.1}
  #allocation0 [shape = 'u32[]', space=smem, size = 0x4, offset = 0x4, fixed_abs, tag = 'smem constant byte address 0x4 - core index']
  #allocation1 [shape = 'u32[72,128]{1,0:T(1,128)}', space=vmem, size = 0x9000, scoped, tag = 'internal scratch']
  %s0 = inlined_call_operand.vmem [shape: f32[32,128], index: 0, kind: input, shape index: {}]
  %s1 = inlined_call_operand.vmem [shape: f32[128,128], index: 1, kind: input, shape index: {}]
  %s2 = inlined_call_operand.vmem [shape: f32[1,128], index: 2, kind: input, shape index: {}]
  %s3 = inlined_call_operand.vmem [shape: f32[128,12], index: 3, kind: input, shape index: {}]
  %s4 = inlined_call_operand.vmem [shape: f32[128,12], index: 4, kind: input, shape index: {}]
  %s5 = inlined_call_operand.vmem [shape: f32[1,12], index: 5, kind: input, shape index: {}]
  %s6 = inlined_call_operand.vmem [shape: f32[1,12], index: 6, kind: input, shape index: {}]
  %s7 = inlined_call_operand.vmem [shape: f32[32,12], index: 7, kind: output, shape index: {}]
  %s8 = sld [smem:[#allocation0]]
  $region38: #{wiberg_head.1} parent=0
    _
  %s10 = ssub.s32 1, %s8
  %s11 = scalar_select 0, %s10, %s8
  // Predicated region
  $region2: #{wiberg_head.1} parent=0 // pred_check
    _
  $region3: #{wiberg_head.1} parent=0 // pred_check_branch
    %13 = sbr.rel (0) target = $region5
  $region4: #{wiberg_head.1} parent=0 // pred_region
    _
  $region5: #{wiberg_head.1} parent=0 // pred_fallthru
    _
  // Predicated region
  $region6: #{wiberg_head.1} parent=0 // pred_check
    _
  $region7: #{wiberg_head.1} parent=0 // pred_check_branch
    %15 = sbr.rel (0) target = $region9
  $region8: #{wiberg_head.1} parent=0 // pred_region
    _
  $region9: #{wiberg_head.1} parent=0 // pred_fallthru
    _
  // Predicated region
  $region10: #{wiberg_head.1} parent=0 // pred_check
    _
  $region11: #{wiberg_head.1} parent=0 // pred_check_branch
    %17 = sbr.rel (0) target = $region13
  $region12: #{wiberg_head.1} parent=0 // pred_region
    _
  $region13: #{wiberg_head.1} parent=0 // pred_fallthru
    _
  // Predicated region
  $region14: #{wiberg_head.1} parent=0 // pred_check
    _
  $region15: #{wiberg_head.1} parent=0 // pred_check_branch
    %19 = sbr.rel (0) target = $region17
  $region16: #{wiberg_head.1} parent=0 // pred_region
    _
  $region17: #{wiberg_head.1} parent=0 // pred_fallthru
    _
  // Predicated region
  $region18: #{wiberg_head.1} parent=0 // pred_check
    _
  $region19: #{wiberg_head.1} parent=0 // pred_check_branch
    %21 = sbr.rel (0) target = $region21
  $region20: #{wiberg_head.1} parent=0 // pred_region
    _
  $region21: #{wiberg_head.1} parent=0 // pred_fallthru
    _
  // Predicated region
  $region22: #{wiberg_head.1} parent=0 // pred_check
    _
  $region23: #{wiberg_head.1} parent=0 // pred_check_branch
    %23 = sbr.rel (0) target = $region25
  $region24: #{wiberg_head.1} parent=0 // pred_region
    _
  $region25: #{wiberg_head.1} parent=0 // pred_fallthru
    _
  // Predicated region
  $region26: #{wiberg_head.1} parent=0 // pred_check
    _
  $region27: #{wiberg_head.1} parent=0 // pred_check_branch
    %25 = sbr.rel (0) target = $region29
  $region28: #{wiberg_head.1} parent=0 // pred_region
    _
  $region29: #{wiberg_head.1} parent=0 // pred_fallthru
    _
  %v26 = vld [vmem:[%s0] sm:$0xff]
  %v27 = vld [vmem:[%s0 + $0x8] sm:$0xff]
  %v28 = vld [vmem:[%s0 + $0x10] sm:$0xff]
  %v29 = vld [vmem:[%s0 + $0x18] sm:$0xff]
  %v30 = vld [vmem:[%s1] sm:$0xff]
  %v31 = vld [vmem:[%s1 + $0x8] sm:$0xff]
  %v32 = vld [vmem:[%s1 + $0x10] sm:$0xff]
  %v33 = vld [vmem:[%s1 + $0x18] sm:$0xff]
  %v34 = vld [vmem:[%s1 + $0x20] sm:$0xff]
  %v35 = vld [vmem:[%s1 + $0x28] sm:$0xff]
  %v36 = vld [vmem:[%s1 + $0x30] sm:$0xff]
  %v37 = vld [vmem:[%s1 + $0x38] sm:$0xff]
  %v38 = vld [vmem:[%s1 + $0x40] sm:$0xff]
  %v39 = vld [vmem:[%s1 + $0x48] sm:$0xff]
  %v40 = vld [vmem:[%s1 + $0x50] sm:$0xff]
  %v41 = vld [vmem:[%s1 + $0x58] sm:$0xff]
  %v42 = vld [vmem:[%s1 + $0x60] sm:$0xff]
  %v43 = vld [vmem:[%s1 + $0x68] sm:$0xff]
  %v44 = vld [vmem:[%s1 + $0x70] sm:$0xff]
  %v45 = vld [vmem:[%s1 + $0x78] sm:$0xff]
  %v46 = vld [vmem:[%s2] sm:$0x1]
  %v48 = vperm.slane %v46, 0
  %50 = vmatpush.msra.mxu0 %v45
  %51 = vmatpush.msra.mxu0 %v44
  %52 = vmatpush.msra.mxu0 %v43
  %53 = vmatpush.msra.mxu0 %v42
  %54 = vmatpush.msra.mxu0 %v41
  %55 = vmatpush.msra.mxu0 %v40
  %56 = vmatpush.msra.mxu0 %v39
  %57 = vmatpush.msra.mxu0 %v38
  %58 = vmatpush.msra.mxu0 %v37
  %59 = vmatpush.msra.mxu0 %v36
  %60 = vmatpush.msra.mxu0 %v35
  %61 = vmatpush.msra.mxu0 %v34
  %62 = vmatpush.msra.mxu0 %v33
  %63 = vmatpush.msra.mxu0 %v32
  %64 = vmatpush.msra.mxu0 %v31
  %65 = vmatpush.msra.mxu0 %v30
  %66 = vmatmul.f32.gmra.mxu0 %v26
  %v67 = vpop.f32.mrf.mxu0
  %v68 = vadd.f32 %v48, %v67
  %69 = vmatmul.f32.gmra.mxu0 %v27
  %v70 = vpop.f32.mrf.mxu0
  %v71 = vadd.f32 %v48, %v70
  %72 = vmatmul.f32.gmra.mxu0 %v28
  %v73 = vpop.f32.mrf.mxu0
  %v74 = vadd.f32 %v48, %v73
  %75 = vmatmul.f32.gmra.mxu0 %v29
  %v76 = vpop.f32.mrf.mxu0
  %v77 = vadd.f32 %v48, %v76
  %78 = vdwg.mxu0
  %v79 = vmul.f32 %v68, %v68
  %v80 = vmul.f32 %v71, %v71
  %v81 = vmul.f32 %v74, %v74
  %v82 = vmul.f32 %v77, %v77
  %v83 = vmul.f32 %v79, 0.035677407
  %v84 = vmul.f32 %v80, 0.035677407
  %v85 = vmul.f32 %v81, 0.035677407
  %v86 = vmul.f32 %v82, 0.035677407
  %v87 = vadd.f32 %v83, 0.7978846
  %v88 = vadd.f32 %v84, 0.7978846
  %v89 = vadd.f32 %v85, 0.7978846
  %v90 = vadd.f32 %v86, 0.7978846
  %v91 = vmul.f32 %v68, %v87
  %v92 = vmul.f32 %v71, %v88
  %v93 = vmul.f32 %v74, %v89
  %v94 = vmul.f32 %v77, %v90
  %v95 = vmul.f32 %v68, 0.5
  %v96 = vmul.f32 %v71, 0.5
  %v97 = vmul.f32 %v74, 0.5
  %v98 = vmul.f32 %v77, 0.5
  %v99 = vtanh.pop %v91
  %v100 = vtanh.pop %v92
  %v101 = vtanh.pop %v93
  %v102 = vtanh.pop %v94
  %v103 = vmul.f32 %v95, %v99
  %v104 = vmul.f32 %v96, %v100
  %v105 = vmul.f32 %v97, %v101
  %v106 = vmul.f32 %v98, %v102
  %v107 = vadd.f32 %v95, %v103
  %v108 = vadd.f32 %v96, %v104
  %v109 = vadd.f32 %v97, %v105
  %v110 = vadd.f32 %v98, %v106
  %v111 = vld [vmem:[%s3] sm:$0xff]
  %v112 = vld [vmem:[%s3 + $0x8] sm:$0xff]
  %v113 = vld [vmem:[%s3 + $0x10] sm:$0xff]
  %v114 = vld [vmem:[%s3 + $0x18] sm:$0xff]
  %v115 = vld [vmem:[%s3 + $0x20] sm:$0xff]
  %v116 = vld [vmem:[%s3 + $0x28] sm:$0xff]
  %v117 = vld [vmem:[%s3 + $0x30] sm:$0xff]
  %v118 = vld [vmem:[%s3 + $0x38] sm:$0xff]
  %v119 = vld [vmem:[%s3 + $0x40] sm:$0xff]
  %v120 = vld [vmem:[%s3 + $0x48] sm:$0xff]
  %v121 = vld [vmem:[%s3 + $0x50] sm:$0xff]
  %v122 = vld [vmem:[%s3 + $0x58] sm:$0xff]
  %v123 = vld [vmem:[%s3 + $0x60] sm:$0xff]
  %v124 = vld [vmem:[%s3 + $0x68] sm:$0xff]
  %v125 = vld [vmem:[%s3 + $0x70] sm:$0xff]
  %v126 = vld [vmem:[%s3 + $0x78] sm:$0xff]
  %127 = vmatpush.msra.mxu0 %v126
  %128 = vmatpush.msra.mxu0 %v125
  %129 = vmatpush.msra.mxu0 %v124
  %130 = vmatpush.msra.mxu0 %v123
  %131 = vmatpush.msra.mxu0 %v122
  %132 = vmatpush.msra.mxu0 %v121
  %133 = vmatpush.msra.mxu0 %v120
  %134 = vmatpush.msra.mxu0 %v119
  %135 = vmatpush.msra.mxu0 %v118
  %136 = vmatpush.msra.mxu0 %v117
  %137 = vmatpush.msra.mxu0 %v116
  %138 = vmatpush.msra.mxu0 %v115
  %139 = vmatpush.msra.mxu0 %v114
  %140 = vmatpush.msra.mxu0 %v113
  %141 = vmatpush.msra.mxu0 %v112
  %142 = vmatpush.msra.mxu0 %v111
  %143 = vmatmul.f32.gmra.mxu0 %v107
  %v144 = vpop.f32.mrf.mxu0
  %v145 = vadd.f32 0.0, %v144
  %146 = vmatmul.f32.gmra.mxu0 %v108
  %v147 = vpop.f32.mrf.mxu0
  %v148 = vadd.f32 0.0, %v147
  %149 = vmatmul.f32.gmra.mxu0 %v109
  %v150 = vpop.f32.mrf.mxu0
  %v151 = vadd.f32 0.0, %v150
  %152 = vmatmul.f32.gmra.mxu0 %v110
  %v153 = vpop.f32.mrf.mxu0
  %v154 = vadd.f32 0.0, %v153
  %155 = vdwg.mxu0
  %v156 = vld [vmem:[%s4] sm:$0xff]
  %v157 = vld [vmem:[%s4 + $0x8] sm:$0xff]
  %v158 = vld [vmem:[%s4 + $0x10] sm:$0xff]
  %v159 = vld [vmem:[%s4 + $0x18] sm:$0xff]
  %v160 = vld [vmem:[%s4 + $0x20] sm:$0xff]
  %v161 = vld [vmem:[%s4 + $0x28] sm:$0xff]
  %v162 = vld [vmem:[%s4 + $0x30] sm:$0xff]
  %v163 = vld [vmem:[%s4 + $0x38] sm:$0xff]
  %v164 = vld [vmem:[%s4 + $0x40] sm:$0xff]
  %v165 = vld [vmem:[%s4 + $0x48] sm:$0xff]
  %v166 = vld [vmem:[%s4 + $0x50] sm:$0xff]
  %v167 = vld [vmem:[%s4 + $0x58] sm:$0xff]
  %v168 = vld [vmem:[%s4 + $0x60] sm:$0xff]
  %v169 = vld [vmem:[%s4 + $0x68] sm:$0xff]
  %v170 = vld [vmem:[%s4 + $0x70] sm:$0xff]
  %v171 = vld [vmem:[%s4 + $0x78] sm:$0xff]
  %172 = vmatpush.msra.mxu0 %v171
  %173 = vmatpush.msra.mxu0 %v170
  %174 = vmatpush.msra.mxu0 %v169
  %175 = vmatpush.msra.mxu0 %v168
  %176 = vmatpush.msra.mxu0 %v167
  %177 = vmatpush.msra.mxu0 %v166
  %178 = vmatpush.msra.mxu0 %v165
  %179 = vmatpush.msra.mxu0 %v164
  %180 = vmatpush.msra.mxu0 %v163
  %181 = vmatpush.msra.mxu0 %v162
  %182 = vmatpush.msra.mxu0 %v161
  %183 = vmatpush.msra.mxu0 %v160
  %184 = vmatpush.msra.mxu0 %v159
  %185 = vmatpush.msra.mxu0 %v158
  %186 = vmatpush.msra.mxu0 %v157
  %187 = vmatpush.msra.mxu0 %v156
  %188 = vmatmul.f32.gmra.mxu0 %v107
  %v189 = vpop.f32.mrf.mxu0
  %v190 = vadd.f32 0.0, %v189
  %191 = vmatmul.f32.gmra.mxu0 %v108
  %v192 = vpop.f32.mrf.mxu0
  %v193 = vadd.f32 0.0, %v192
  %194 = vmatmul.f32.gmra.mxu0 %v109
  %v195 = vpop.f32.mrf.mxu0
  %v196 = vadd.f32 0.0, %v195
  %197 = vmatmul.f32.gmra.mxu0 %v110
  %v198 = vpop.f32.mrf.mxu0
  %v199 = vadd.f32 0.0, %v198
  %200 = vdwg.mxu0
  %v201 = vmul.f32 %v107, %v107
  %v202 = vmul.f32 %v108, %v108
  %v203 = vmul.f32 %v109, %v109
  %v204 = vmul.f32 %v110, %v110
  %205 = vmatpush.msra.mxu0 %v171
  %206 = vmatpush.msra.mxu0 %v170
  %207 = vmatpush.msra.mxu0 %v169
  %208 = vmatpush.msra.mxu0 %v168
  %209 = vmatpush.msra.mxu0 %v167
  %210 = vmatpush.msra.mxu0 %v166
  %211 = vmatpush.msra.mxu0 %v165
  %212 = vmatpush.msra.mxu0 %v164
  %213 = vmatpush.msra.mxu0 %v163
  %214 = vmatpush.msra.mxu0 %v162
  %215 = vmatpush.msra.mxu0 %v161
  %216 = vmatpush.msra.mxu0 %v160
  %217 = vmatpush.msra.mxu0 %v159
  %218 = vmatpush.msra.mxu0 %v158
  %219 = vmatpush.msra.mxu0 %v157
  %220 = vmatpush.msra.mxu0 %v156
  %221 = vmatmul.f32.gmra.mxu0 %v201
  %v222 = vpop.f32.mrf.mxu0
  %v223 = vadd.f32 0.0, %v222
  %224 = vmatmul.f32.gmra.mxu0 %v202
  %v225 = vpop.f32.mrf.mxu0
  %v226 = vadd.f32 0.0, %v225
  %227 = vmatmul.f32.gmra.mxu0 %v203
  %v228 = vpop.f32.mrf.mxu0
  %v229 = vadd.f32 0.0, %v228
  %230 = vmatmul.f32.gmra.mxu0 %v204
  %v231 = vpop.f32.mrf.mxu0
  %v232 = vadd.f32 0.0, %v231
  %233 = vdwg.mxu0
  %v234 = vmul.f32 %v190, %v190
  %v235 = vmul.f32 %v193, %v193
  %v236 = vmul.f32 %v196, %v196
  %v237 = vmul.f32 %v199, %v199
  %v238 = vsub.f32 %v223, %v234
  %v239 = vsub.f32 %v226, %v235
  %v240 = vsub.f32 %v229, %v236
  %v241 = vsub.f32 %v232, %v237
  %v242 = vmax.f32 %v238, 0.0
  %v243 = vmax.f32 %v239, 0.0
  %v244 = vmax.f32 %v240, 0.0
  %v245 = vmax.f32 %v241, 0.0
  %v246 = vadd.f32 %v242, 1e-05
  %v247 = vadd.f32 %v243, 1e-05
  %v248 = vadd.f32 %v244, 1e-05
  %v249 = vadd.f32 %v245, 1e-05
  %v250 = vrsqrt.pop %v246
  %v251 = vmul.f32 %v250, %v246
  %v252 = vmul.f32 %v251, %v250
  %v253 = vmul.f32 0.5, %v252
  %v254 = vsub.f32 1.5, %v253
  %v255 = vmul.f32 %v250, %v254
  %vm256 = vweird.f32 %v246
  %vm257 = vweird.f32 %v250
  %vm258 = vmor %vm256, %vm257
  %v259 = vsel %vm258, %v250, %v255
  %v260 = vrsqrt.pop %v247
  %v261 = vmul.f32 %v260, %v247
  %v262 = vmul.f32 %v261, %v260
  %v263 = vmul.f32 0.5, %v262
  %v264 = vsub.f32 1.5, %v263
  %v265 = vmul.f32 %v260, %v264
  %vm266 = vweird.f32 %v247
  %vm267 = vweird.f32 %v260
  %vm268 = vmor %vm266, %vm267
  %v269 = vsel %vm268, %v260, %v265
  %v270 = vrsqrt.pop %v248
  %v271 = vmul.f32 %v270, %v248
  %v272 = vmul.f32 %v271, %v270
  %v273 = vmul.f32 0.5, %v272
  %v274 = vsub.f32 1.5, %v273
  %v275 = vmul.f32 %v270, %v274
  %vm276 = vweird.f32 %v248
  %vm277 = vweird.f32 %v270
  %vm278 = vmor %vm276, %vm277
  %v279 = vsel %vm278, %v270, %v275
  %v280 = vrsqrt.pop %v249
  %v281 = vmul.f32 %v280, %v249
  %v282 = vmul.f32 %v281, %v280
  %v283 = vmul.f32 0.5, %v282
  %v284 = vsub.f32 1.5, %v283
  %v285 = vmul.f32 %v280, %v284
  %vm286 = vweird.f32 %v249
  %vm287 = vweird.f32 %v280
  %vm288 = vmor %vm286, %vm287
  %v289 = vsel %vm288, %v280, %v285
  %v290 = vld [vmem:[%s5] sm:$0x1]
  %v292 = vperm.slane %v290, 0
  %v294 = vmul.f32 %v190, %v292
  %v295 = vmul.f32 %v193, %v292
  %v296 = vmul.f32 %v196, %v292
  %v297 = vmul.f32 %v199, %v292
  %v298 = vsub.f32 %v145, %v294
  %v299 = vsub.f32 %v148, %v295
  %v300 = vsub.f32 %v151, %v296
  %v301 = vsub.f32 %v154, %v297
  %v302 = vmul.f32 %v298, %v259
  %v303 = vmul.f32 %v299, %v269
  %v304 = vmul.f32 %v300, %v279
  %v305 = vmul.f32 %v301, %v289
  %v306 = vld [vmem:[%s6] sm:$0x1]
  %v308 = vperm.slane %v306, 0
  %v310 = vadd.f32 %v302, %v308
  %v311 = vadd.f32 %v303, %v308
  %v312 = vadd.f32 %v304, %v308
  %v313 = vadd.f32 %v305, %v308
  %vm314 = vcmask 97280
  %315 = vst.msk [vmem:[%s7] sm:$0xff] %vm314, %v310
  %316 = vst.msk [vmem:[%s7 + $0x8] sm:$0xff] %vm314, %v311
  %317 = vst.msk [vmem:[%s7 + $0x10] sm:$0xff] %vm314, %v312
  %318 = vst.msk [vmem:[%s7 + $0x18] sm:$0xff] %vm314, %v313
  // Predicated region
  $region30: #{wiberg_head.1} parent=0 // pred_check
    _
  $region31: #{wiberg_head.1} parent=0 // pred_check_branch
    %320 = sbr.rel (0) target = $region33
  $region32: #{wiberg_head.1} parent=0 // pred_region
    _
  $region33: #{wiberg_head.1} parent=0 // pred_fallthru
    _
  // Predicated region
  $region34: #{wiberg_head.1} parent=0 // pred_check
    _
  $region35: #{wiberg_head.1} parent=0 // pred_check_branch
    %322 = sbr.rel (0) target = $region37
  $region36: #{wiberg_head.1} parent=0 // pred_region
    _
  $region37: #{wiberg_head.1} parent=0 // pred_fallthru
    _

</llo_original>
